<compile_context>
chip_gen: v6e
topology: v6e:2x2x1
jax: 0.10.0
libtpu: 0.0.40
codegen_flags: <defaults>
</compile_context>

<pallas_src>
import math
from functools import partial

import jax
import jax.numpy as jnp
from jax.experimental import pallas as pl
from jax.experimental.pallas import tpu as pltpu


# ---------------------------------------------------------------------------
# Kernel body
# ---------------------------------------------------------------------------
def _biasfree_ln_kernel(x_ref, w_ref, o_ref, *, eps):
    # x_ref / o_ref: (tm, C)   w_ref: (1, C)
    x = x_ref[...].astype(jnp.float32)
    mu = jnp.mean(x, axis=-1, keepdims=True)                      # XLU lane-reduce
    diff = x - mu                                                 # VPU
    var = jnp.mean(diff * diff, axis=-1, keepdims=True)           # unbiased=False
    inv = jax.lax.rsqrt(var + eps)                                # EUP rsqrt
    w = w_ref[...].astype(jnp.float32)                            # (1, C) lane-broadcast
    o_ref[...] = (x * inv * w).astype(o_ref.dtype)


# ---------------------------------------------------------------------------
# Tiling policy
# ---------------------------------------------------------------------------
_TARGET_BLOCK_BYTES = 4 << 20      # ~4 MiB of HBM input traffic per grid step
_VMEM_PIPELINE_BUDGET = 24 << 20   # 2 buffers x (in + out) blocks must fit here
_VMEM_LIMIT_BYTES = 32 << 20       # scoped VMEM request; safe on v5e/v6e/v7x


def _select_row_tile(rows, c, dtype, max_rows=None):
    """Row-tile sized by bytes, VMEM-budgeted, dtype/sublane aware."""
    itemsize = jnp.dtype(dtype).itemsize
    sublane = max(8, 32 // itemsize)             # f32 -> 8, bf16 -> 16, int8/fp8 -> 32
    c_pad = -(-max(c, 128) // 128) * 128         # lane-padded VMEM footprint per row

    # Size by HBM bytes per step ...
    tm = _TARGET_BLOCK_BYTES // max(c * itemsize, 1)
    # ... and cap so 2 double-buffered (in + out) blocks fit the VMEM budget.
    tm = min(tm, _VMEM_PIPELINE_BUDGET // (4 * c_pad * itemsize))
    if max_rows is not None:
        tm = min(tm, max_rows)

    if tm >= rows:
        return rows                               # full-extent block (always legal)
    return max(sublane, (tm // sublane) * sublane)


# ---------------------------------------------------------------------------
# Wrapper
# ---------------------------------------------------------------------------
def bias_free_layer_norm(x, weight, eps=1e-5, max_block_rows=None):
    """BiasFree_LayerNorm.forward: normalize over the last dim of x."""
    *lead, C = x.shape
    rows = math.prod(lead) if lead else 1
    x2 = x.reshape(rows, C)
    w2 = weight.reshape(1, C)

    tm = _select_row_tile(rows, C, x.dtype, max_block_rows)
    grid = (pl.cdiv(rows, tm),)                   # partial last block handled by Pallas

    itemsize = jnp.dtype(x.dtype).itemsize
    cost = pl.CostEstimate(
        flops=5 * rows * C,
        transcendentals=rows,
        bytes_accessed=2 * rows * C * itemsize
        + C * jnp.dtype(weight.dtype).itemsize,
    )

    kernel = partial(_biasfree_ln_kernel, eps=float(eps))

    out = pl.pallas_call(
        kernel,
        out_shape=jax.ShapeDtypeStruct((rows, C), x.dtype),
        grid_spec=pltpu.PrefetchScalarGridSpec(
            num_scalar_prefetch=0,
            grid=grid,
            in_specs=[
                pl.BlockSpec((tm, C), lambda i: (i, 0)),
                pl.BlockSpec((1, C), lambda i: (0, 0)),
            ],
            out_specs=pl.BlockSpec((tm, C), lambda i: (i, 0)),
        ),
        compiler_params=pltpu.CompilerParams(
            dimension_semantics=("parallel",),    # rows independent -> multi-TC shard
            vmem_limit_bytes=_VMEM_LIMIT_BYTES,
        ),
        cost_estimate=cost,
    )(x2, w2)

    return out.reshape(x.shape)


# ---------------------------------------------------------------------------
# Pure-JAX reference (matches the PyTorch module exactly)
# ---------------------------------------------------------------------------
def _reference(x, weight, eps=1e-5):
    mu = jnp.mean(x, axis=-1, keepdims=True)
    var = jnp.mean((x - mu) ** 2, axis=-1, keepdims=True)   # unbiased=False
    return x / jnp.sqrt(var + eps) * weight                 # bias-free: no mean sub


if __name__ == "__main__":
    key = jax.random.PRNGKey(0)

    # Case 1: lane-dense channels. batch=2, seq=64, hidden=128.
    B, T, C = 2, 64, 128
    kx, kw = jax.random.split(key)
    x = jax.random.normal(kx, (B, T, C), jnp.float32)
    weight = 1.0 + 0.1 * jax.random.normal(kw, (C,), jnp.float32)
    out = jax.block_until_ready(bias_free_layer_norm(x, weight))
    assert out.shape == x.shape
    assert jnp.allclose(out, _reference(x, weight), atol=1e-4, rtol=1e-4), \
        "mismatch vs reference (C=128)"

    # Case 2: C < 128 and 4-D leading dims (masked stores path).
    B2, Hh, Ww, C2 = 2, 4, 16, 48
    kx2, kw2 = jax.random.split(kw)
    x2 = jax.random.normal(kx2, (B2, Hh, Ww, C2), jnp.float32)
    w2 = 1.0 + 0.1 * jax.random.normal(kw2, (C2,), jnp.float32)
    out2 = jax.block_until_ready(bias_free_layer_norm(x2, w2))
    assert jnp.allclose(out2, _reference(x2, w2), atol=1e-4, rtol=1e-4), \
        "mismatch vs reference (C=48)"

    # Case 3: exercise the cdiv / partial-last-block path explicitly
    # (rows=42 not a multiple of the forced 16-row tile).
    kx3, kw3 = jax.random.split(kw2)
    x3 = jax.random.normal(kx3, (3, 14, 48), jnp.float32)
    w3 = 1.0 + 0.1 * jax.random.normal(kw3, (48,), jnp.float32)
    out3 = jax.block_until_ready(bias_free_layer_norm(x3, w3, max_block_rows=16))
    assert jnp.allclose(out3, _reference(x3, w3), atol=1e-4, rtol=1e-4), \
        "mismatch vs reference (partial block)"

    print("KERNEL_OK")
</pallas_src>

<mosaic_0001>
module attributes {stable_mosaic.version = 11 : i64} {
  func.func @_biasfree_ln_kernel(%arg0: i32, %arg1: memref<128x128xf32, #tpu.memory_space<vmem>>, %arg2: memref<1x128xf32, #tpu.memory_space<vmem>>, %arg3: memref<128x128xf32, #tpu.memory_space<vmem>>) attributes {dimension_semantics = [#tpu.dimension_semantics<parallel>], iteration_bounds = array<i64: 1>, scalar_prefetch = 0 : i64, scratch_operands = 0 : i64, tpu.core_type = #tpu.core_type<tc>, window_params = [{transform_indices = @transform_0, window_bounds = array<i64: 128, 128>}, {pipeline_mode = #tpu.pipeline_mode<synchronous>, transform_indices = @transform_1, window_bounds = array<i64: 1, 128>}, {transform_indices = @transform_2, window_bounds = array<i64: 128, 128>}]} {
    %c0 = arith.constant 0 : index
    %c0_0 = arith.constant 0 : index
    %0 = vector.load %arg1[%c0, %c0_0] : memref<128x128xf32, #tpu.memory_space<vmem>>, vector<128x128xf32>
    %cst = arith.constant dense<0.000000e+00> : vector<128xf32>
    %1 = vector.multi_reduction <add>, %0, %cst [1] : vector<128x128xf32> to vector<128xf32>
    %2 = vector.shape_cast %1 : vector<128xf32> to vector<128x1xf32>
    %cst_1 = arith.constant 1.280000e+02 : f32
    %3 = vector.broadcast %cst_1 : f32 to vector<128x1xf32>
    %4 = arith.divf %2, %3 : vector<128x1xf32>
    %5 = vector.broadcast %4 : vector<128x1xf32> to vector<128x128xf32>
    %6 = arith.subf %0, %5 : vector<128x128xf32>
    %7 = arith.mulf %6, %6 : vector<128x128xf32>
    %cst_2 = arith.constant dense<0.000000e+00> : vector<128xf32>
    %8 = vector.multi_reduction <add>, %7, %cst_2 [1] : vector<128x128xf32> to vector<128xf32>
    %9 = vector.shape_cast %8 : vector<128xf32> to vector<128x1xf32>
    %cst_3 = arith.constant 1.280000e+02 : f32
    %10 = vector.broadcast %cst_3 : f32 to vector<128x1xf32>
    %11 = arith.divf %9, %10 : vector<128x1xf32>
    %cst_4 = arith.constant 9.99999974E-6 : f32
    %12 = vector.broadcast %cst_4 : f32 to vector<128x1xf32>
    %13 = arith.addf %11, %12 : vector<128x1xf32>
    %14 = math.rsqrt %13 : vector<128x1xf32>
    %c0_5 = arith.constant 0 : index
    %c0_6 = arith.constant 0 : index
    %15 = vector.load %arg2[%c0_5, %c0_6] : memref<1x128xf32, #tpu.memory_space<vmem>>, vector<1x128xf32>
    %16 = vector.broadcast %14 : vector<128x1xf32> to vector<128x128xf32>
    %17 = arith.mulf %0, %16 : vector<128x128xf32>
    %18 = vector.broadcast %15 : vector<1x128xf32> to vector<128x128xf32>
    %19 = arith.mulf %17, %18 : vector<128x128xf32>
    %c0_7 = arith.constant 0 : index
    %c0_8 = arith.constant 0 : index
    %20 = vector.load %arg3[%c0_7, %c0_8] : memref<128x128xf32, #tpu.memory_space<vmem>>, vector<128x128xf32>
    tpu.vector_store %arg3[%c0_7, %c0_8], %19 {strides = array<i32>} : memref<128x128xf32, #tpu.memory_space<vmem>>, vector<128x128xf32>,
    return
  }
  func.func @transform_0(%arg0: i32) -> (i32, i32) {
    %c0_i32 = arith.constant 0 : i32
    %c0_i32_0 = arith.constant 0 : i32
    return %arg0, %c0_i32 : i32, i32
  }
  func.func @transform_1(%arg0: i32) -> (i32, i32) {
    %c0_i32 = arith.constant 0 : i32
    %c0_i32_0 = arith.constant 0 : i32
    %c0_i32_1 = arith.constant 0 : i32
    return %c0_i32, %c0_i32_0 : i32, i32
  }
  func.func @transform_2(%arg0: i32) -> (i32, i32) {
    %c0_i32 = arith.constant 0 : i32
    %c0_i32_0 = arith.constant 0 : i32
    return %arg0, %c0_i32 : i32, i32
  }
}

</mosaic_0001>

<llo_original>
// kernel: tpu_custom_call.1
$region0: #{tpu_custom_call.1}
  #allocation0 [shape = 'u32[]', space=smem, size = 0x4, offset = 0x4, fixed_abs, tag = 'smem constant byte address 0x4 - core index']
  #allocation1 [shape = 'u32[144,128]{1,0:T(1,128)}', space=vmem, size = 0x12000, scoped, tag = 'internal scratch']
  %s0 = inlined_call_operand.hbm [shape: f32[128,128], index: 0, kind: input, shape index: {}]
  %s1 = inlined_call_operand.vmem [shape: f32[1,128], index: 1, kind: input, shape index: {}]
  %s2 = inlined_call_operand.hbm [shape: f32[128,128], index: 2, kind: output, shape index: {}]
  %s3 = sld [smem:[#allocation0]]
  $region22: #{tpu_custom_call.1} parent=0
    _
  %s5 = ssub.s32 1, %s3
  %s6 = scalar_select 0, %s5, %s3
  $region1: #{tpu_custom_call.1} parent=0
    #allocation2 [shape = 'u8[65536]{0}', space=vmem, size = 0x10000, scoped, tag = 'input window, operand 0, single buffered']
    #allocation3 [shape = 's32[1]{0}', space=sflag, size = 0x4, scoped, tag = 'scoped memory for tpu_custom_call.1']
    #allocation4 [shape = 's32[1]{0}', space=sflag, size = 0x4, scoped, tag = 'scoped memory for tpu_custom_call.1']
    #allocation5 [shape = 'u8[65536]{0}', space=vmem, size = 0x10000, scoped, tag = 'output window, operand 0, single buffered']
    %7 = vsyncpa [#allocation3], 0
    %8 = vsyncpa [#allocation4], 0
    // Predicated region
    $region2: #{tpu_custom_call.1} parent=1 // pred_check
      _
    $region3: #{tpu_custom_call.1} parent=1 // pred_check_branch
      %10 = sbr.rel (0) target = $region5
    $region4: #{tpu_custom_call.1} parent=1 // pred_region
      %s12 = ssub.s32 2048, 2048
      %13 = vsyncadd [#allocation3], %s12
      %s14 = sshll.u32 [#allocation2], 4
      %s15 = int_to_ptr.vmem [resolvable:$true] %s14
      %20 = dma.hbm_to_vmem [thread:$0]  %s0, 2048, %s15, [#allocation3], 128, 128, 8
    $region5: #{tpu_custom_call.1} parent=1 // pred_fallthru
      _
    // Predicated region
    $region6: #{tpu_custom_call.1} parent=1 // pred_check
      _
    $region7: #{tpu_custom_call.1} parent=1 // pred_check_branch
      %22 = sbr.rel (0) target = $region9
    $region8: #{tpu_custom_call.1} parent=1 // pred_region
      _
    $region9: #{tpu_custom_call.1} parent=1 // pred_fallthru
      _
    // Predicated region
    $region10: #{tpu_custom_call.1} parent=1 // pred_check
      _
    $region11: #{tpu_custom_call.1} parent=1 // pred_check_branch
      %24 = sbr.rel (0) target = $region13
    $region12: #{tpu_custom_call.1} parent=1 // pred_region
      %25 = dma.done [#allocation3], 2048
    $region13: #{tpu_custom_call.1} parent=1 // pred_fallthru
      _
    %v26 = vld [vmem:[#allocation2] sm:$0xff]
    %v27 = vld [vmem:[#allocation2 + $0x8] sm:$0xff]
    %v28 = vld [vmem:[#allocation2 + $0x10] sm:$0xff]
    %v29 = vld [vmem:[#allocation2 + $0x18] sm:$0xff]
    %v30 = vld [vmem:[#allocation2 + $0x20] sm:$0xff]
    %v31 = vld [vmem:[#allocation2 + $0x28] sm:$0xff]
    %v32 = vld [vmem:[#allocation2 + $0x30] sm:$0xff]
    %v33 = vld [vmem:[#allocation2 + $0x38] sm:$0xff]
    %v34 = vld [vmem:[#allocation2 + $0x40] sm:$0xff]
    %v35 = vld [vmem:[#allocation2 + $0x48] sm:$0xff]
    %v36 = vld [vmem:[#allocation2 + $0x50] sm:$0xff]
    %v37 = vld [vmem:[#allocation2 + $0x58] sm:$0xff]
    %v38 = vld [vmem:[#allocation2 + $0x60] sm:$0xff]
    %v39 = vld [vmem:[#allocation2 + $0x68] sm:$0xff]
    %v40 = vld [vmem:[#allocation2 + $0x70] sm:$0xff]
    %v41 = vld [vmem:[#allocation2 + $0x78] sm:$0xff]
    %42 = vadd.xlane.f32.xlu0 %v26
    %v43 = vpop.xlane.xlu0 %42
    %44 = vadd.xlane.f32.xlu0 %v27
    %v45 = vpop.xlane.xlu0 %44
    %46 = vadd.xlane.f32.xlu0 %v28
    %v47 = vpop.xlane.xlu0 %46
    %48 = vadd.xlane.f32.xlu0 %v29
    %v49 = vpop.xlane.xlu0 %48
    %50 = vadd.xlane.f32.xlu0 %v30
    %v51 = vpop.xlane.xlu0 %50
    %52 = vadd.xlane.f32.xlu0 %v31
    %v53 = vpop.xlane.xlu0 %52
    %54 = vadd.xlane.f32.xlu0 %v32
    %v55 = vpop.xlane.xlu0 %54
    %56 = vadd.xlane.f32.xlu0 %v33
    %v57 = vpop.xlane.xlu0 %56
    %58 = vadd.xlane.f32.xlu0 %v34
    %v59 = vpop.xlane.xlu0 %58
    %60 = vadd.xlane.f32.xlu0 %v35
    %v61 = vpop.xlane.xlu0 %60
    %62 = vadd.xlane.f32.xlu0 %v36
    %v63 = vpop.xlane.xlu0 %62
    %64 = vadd.xlane.f32.xlu0 %v37
    %v65 = vpop.xlane.xlu0 %64
    %66 = vadd.xlane.f32.xlu0 %v38
    %v67 = vpop.xlane.xlu0 %66
    %68 = vadd.xlane.f32.xlu0 %v39
    %v69 = vpop.xlane.xlu0 %68
    %70 = vadd.xlane.f32.xlu0 %v40
    %v71 = vpop.xlane.xlu0 %70
    %72 = vadd.xlane.f32.xlu0 %v41
    %v73 = vpop.xlane.xlu0 %72
    %v74 = vrcp.pop 128.0
    %v75 = vmul.f32 %v43, %v74
    %v76 = vmul.f32 %v45, %v74
    %v77 = vmul.f32 %v47, %v74
    %v78 = vmul.f32 %v49, %v74
    %v79 = vmul.f32 %v51, %v74
    %v80 = vmul.f32 %v53, %v74
    %v81 = vmul.f32 %v55, %v74
    %v82 = vmul.f32 %v57, %v74
    %v83 = vmul.f32 %v59, %v74
    %v84 = vmul.f32 %v61, %v74
    %v85 = vmul.f32 %v63, %v74
    %v86 = vmul.f32 %v65, %v74
    %v87 = vmul.f32 %v67, %v74
    %v88 = vmul.f32 %v69, %v74
    %v89 = vmul.f32 %v71, %v74
    %v90 = vmul.f32 %v73, %v74
    %v91 = vsub.f32 %v26, %v75
    %v92 = vsub.f32 %v27, %v76
    %v93 = vsub.f32 %v28, %v77
    %v94 = vsub.f32 %v29, %v78
    %v95 = vsub.f32 %v30, %v79
    %v96 = vsub.f32 %v31, %v80
    %v97 = vsub.f32 %v32, %v81
    %v98 = vsub.f32 %v33, %v82
    %v99 = vsub.f32 %v34, %v83
    %v100 = vsub.f32 %v35, %v84
    %v101 = vsub.f32 %v36, %v85
    %v102 = vsub.f32 %v37, %v86
    %v103 = vsub.f32 %v38, %v87
    %v104 = vsub.f32 %v39, %v88
    %v105 = vsub.f32 %v40, %v89
    %v106 = vsub.f32 %v41, %v90
    %v107 = vmul.f32 %v91, %v91
    %v108 = vmul.f32 %v92, %v92
    %v109 = vmul.f32 %v93, %v93
    %v110 = vmul.f32 %v94, %v94
    %v111 = vmul.f32 %v95, %v95
    %v112 = vmul.f32 %v96, %v96
    %v113 = vmul.f32 %v97, %v97
    %v114 = vmul.f32 %v98, %v98
    %v115 = vmul.f32 %v99, %v99
    %v116 = vmul.f32 %v100, %v100
    %v117 = vmul.f32 %v101, %v101
    %v118 = vmul.f32 %v102, %v102
    %v119 = vmul.f32 %v103, %v103
    %v120 = vmul.f32 %v104, %v104
    %v121 = vmul.f32 %v105, %v105
    %v122 = vmul.f32 %v106, %v106
    %123 = vadd.xlane.f32.xlu0 %v107
    %v124 = vpop.xlane.xlu0 %123
    %125 = vadd.xlane.f32.xlu0 %v108
    %v126 = vpop.xlane.xlu0 %125
    %127 = vadd.xlane.f32.xlu0 %v109
    %v128 = vpop.xlane.xlu0 %127
    %129 = vadd.xlane.f32.xlu0 %v110
    %v130 = vpop.xlane.xlu0 %129
    %131 = vadd.xlane.f32.xlu0 %v111
    %v132 = vpop.xlane.xlu0 %131
    %133 = vadd.xlane.f32.xlu0 %v112
    %v134 = vpop.xlane.xlu0 %133
    %135 = vadd.xlane.f32.xlu0 %v113
    %v136 = vpop.xlane.xlu0 %135
    %137 = vadd.xlane.f32.xlu0 %v114
    %v138 = vpop.xlane.xlu0 %137
    %139 = vadd.xlane.f32.xlu0 %v115
    %v140 = vpop.xlane.xlu0 %139
    %141 = vadd.xlane.f32.xlu0 %v116
    %v142 = vpop.xlane.xlu0 %141
    %143 = vadd.xlane.f32.xlu0 %v117
    %v144 = vpop.xlane.xlu0 %143
    %145 = vadd.xlane.f32.xlu0 %v118
    %v146 = vpop.xlane.xlu0 %145
    %147 = vadd.xlane.f32.xlu0 %v119
    %v148 = vpop.xlane.xlu0 %147
    %149 = vadd.xlane.f32.xlu0 %v120
    %v150 = vpop.xlane.xlu0 %149
    %151 = vadd.xlane.f32.xlu0 %v121
    %v152 = vpop.xlane.xlu0 %151
    %153 = vadd.xlane.f32.xlu0 %v122
    %v154 = vpop.xlane.xlu0 %153
    %v155 = vmul.f32 %v124, %v74
    %v156 = vmul.f32 %v126, %v74
    %v157 = vmul.f32 %v128, %v74
    %v158 = vmul.f32 %v130, %v74
    %v159 = vmul.f32 %v132, %v74
    %v160 = vmul.f32 %v134, %v74
    %v161 = vmul.f32 %v136, %v74
    %v162 = vmul.f32 %v138, %v74
    %v163 = vmul.f32 %v140, %v74
    %v164 = vmul.f32 %v142, %v74
    %v165 = vmul.f32 %v144, %v74
    %v166 = vmul.f32 %v146, %v74
    %v167 = vmul.f32 %v148, %v74
    %v168 = vmul.f32 %v150, %v74
    %v169 = vmul.f32 %v152, %v74
    %v170 = vmul.f32 %v154, %v74
    %v171 = vadd.f32 %v155, 1e-05
    %v172 = vadd.f32 %v156, 1e-05
    %v173 = vadd.f32 %v157, 1e-05
    %v174 = vadd.f32 %v158, 1e-05
    %v175 = vadd.f32 %v159, 1e-05
    %v176 = vadd.f32 %v160, 1e-05
    %v177 = vadd.f32 %v161, 1e-05
    %v178 = vadd.f32 %v162, 1e-05
    %v179 = vadd.f32 %v163, 1e-05
    %v180 = vadd.f32 %v164, 1e-05
    %v181 = vadd.f32 %v165, 1e-05
    %v182 = vadd.f32 %v166, 1e-05
    %v183 = vadd.f32 %v167, 1e-05
    %v184 = vadd.f32 %v168, 1e-05
    %v185 = vadd.f32 %v169, 1e-05
    %v186 = vadd.f32 %v170, 1e-05
    %v187 = vrsqrt.pop %v171
    %v188 = vrsqrt.pop %v172
    %v189 = vrsqrt.pop %v173
    %v190 = vrsqrt.pop %v174
    %v191 = vrsqrt.pop %v175
    %v192 = vrsqrt.pop %v176
    %v193 = vrsqrt.pop %v177
    %v194 = vrsqrt.pop %v178
    %v195 = vrsqrt.pop %v179
    %v196 = vrsqrt.pop %v180
    %v197 = vrsqrt.pop %v181
    %v198 = vrsqrt.pop %v182
    %v199 = vrsqrt.pop %v183
    %v200 = vrsqrt.pop %v184
    %v201 = vrsqrt.pop %v185
    %v202 = vrsqrt.pop %v186
    %v203 = vld [vmem:[%s1] sm:$0x1]
    %v204 = vmul.f32 %v26, %v187
    %v205 = vmul.f32 %v27, %v188
    %v206 = vmul.f32 %v28, %v189
    %v207 = vmul.f32 %v29, %v190
    %v208 = vmul.f32 %v30, %v191
    %v209 = vmul.f32 %v31, %v192
    %v210 = vmul.f32 %v32, %v193
    %v211 = vmul.f32 %v33, %v194
    %v212 = vmul.f32 %v34, %v195
    %v213 = vmul.f32 %v35, %v196
    %v214 = vmul.f32 %v36, %v197
    %v215 = vmul.f32 %v37, %v198
    %v216 = vmul.f32 %v38, %v199
    %v217 = vmul.f32 %v39, %v200
    %v218 = vmul.f32 %v40, %v201
    %v219 = vmul.f32 %v41, %v202
    %v221 = vlaneseq
    %v222 = vshrl.u32 %v221, 7
    %v223 = vsub.s32 0, %v222
    %v224 = vrot.slane %v203, %v223
    %v226 = vmul.f32 %v204, %v224
    %v227 = vmul.f32 %v205, %v224
    %v228 = vmul.f32 %v206, %v224
    %v229 = vmul.f32 %v207, %v224
    %v230 = vmul.f32 %v208, %v224
    %v231 = vmul.f32 %v209, %v224
    %v232 = vmul.f32 %v210, %v224
    %v233 = vmul.f32 %v211, %v224
    %v234 = vmul.f32 %v212, %v224
    %v235 = vmul.f32 %v213, %v224
    %v236 = vmul.f32 %v214, %v224
    %v237 = vmul.f32 %v215, %v224
    %v238 = vmul.f32 %v216, %v224
    %v239 = vmul.f32 %v217, %v224
    %v240 = vmul.f32 %v218, %v224
    %v241 = vmul.f32 %v219, %v224
    %242 = vst [vmem:[#allocation5] sm:$0xff] %v226
    %243 = vst [vmem:[#allocation5 + $0x8] sm:$0xff] %v227
    %244 = vst [vmem:[#allocation5 + $0x10] sm:$0xff] %v228
    %245 = vst [vmem:[#allocation5 + $0x18] sm:$0xff] %v229
    %246 = vst [vmem:[#allocation5 + $0x20] sm:$0xff] %v230
    %247 = vst [vmem:[#allocation5 + $0x28] sm:$0xff] %v231
    %248 = vst [vmem:[#allocation5 + $0x30] sm:$0xff] %v232
    %249 = vst [vmem:[#allocation5 + $0x38] sm:$0xff] %v233
    %250 = vst [vmem:[#allocation5 + $0x40] sm:$0xff] %v234
    %251 = vst [vmem:[#allocation5 + $0x48] sm:$0xff] %v235
    %252 = vst [vmem:[#allocation5 + $0x50] sm:$0xff] %v236
    %253 = vst [vmem:[#allocation5 + $0x58] sm:$0xff] %v237
    %254 = vst [vmem:[#allocation5 + $0x60] sm:$0xff] %v238
    %255 = vst [vmem:[#allocation5 + $0x68] sm:$0xff] %v239
    %256 = vst [vmem:[#allocation5 + $0x70] sm:$0xff] %v240
    %257 = vst [vmem:[#allocation5 + $0x78] sm:$0xff] %v241
    // Predicated region
    $region14: #{tpu_custom_call.1} parent=1 // pred_check
      _
    $region15: #{tpu_custom_call.1} parent=1 // pred_check_branch
      %259 = sbr.rel (0) target = $region17
    $region16: #{tpu_custom_call.1} parent=1 // pred_region
      %s261 = ssub.s32 2048, 2048
      %262 = vsyncadd [#allocation4], %s261
      %s263 = sshll.u32 [#allocation5], 4
      %s264 = int_to_ptr.vmem [resolvable:$true] %s263
      %269 = dma.vmem_to_hbm [thread:$0]  %s264, 2048, %s2, [#allocation4], 128, 128, 8
    $region17: #{tpu_custom_call.1} parent=1 // pred_fallthru
      _
    // Predicated region
    $region18: #{tpu_custom_call.1} parent=1 // pred_check
      _
    $region19: #{tpu_custom_call.1} parent=1 // pred_check_branch
      %271 = sbr.rel (0) target = $region21
    $region20: #{tpu_custom_call.1} parent=1 // pred_region
      %272 = dma.done [#allocation4], 2048
    $region21: #{tpu_custom_call.1} parent=1 // pred_fallthru
      _
    %273 = vsyncpa [#allocation3], 1
    %274 = vsyncpa [#allocation4], 1

</llo_original>
